<compile_context>
chip_gen: v7x
topology: tpu7x:2x2x1
jax: 0.10.0
libtpu: 0.0.40
codegen_flags: <defaults>
</compile_context>

<pallas_src>
import functools

import jax
import jax.numpy as jnp
from jax import lax
from jax.experimental import pallas as pl
from jax.experimental.pallas import tpu as pltpu


def _residual1d_kernel(w_ref, b_ref, x_ref, o_ref, *, shifts, L):
    """One batch-folded block per grid step.

    w_ref : (C, K*C)        tap-fused conv weights, w2[o, k*C + ci] = w[o, ci, k]
    b_ref : (C, 1)          conv bias
    x_ref : (C, Bblk*L)     lane-folded input block (Bblk length-L segments)
    o_ref : (C, Bblk*L)     lane-folded output block
    """
    w2 = w_ref[...]                        # (C, K*C)
    bias = b_ref[...]                      # (C, 1)
    x = x_ref[...].astype(jnp.float32)     # (C, N), N = Bblk*L
    C, N = x.shape

    # Hoisted once per block and shared by BOTH conv applications:
    # segment-local lane index and one boundary mask per nonzero tap shift.
    lane = lax.broadcasted_iota(jnp.int32, (C, N), 1) % L
    masks = {s: (lane >= -s) if s < 0 else (lane < L - s)
             for s in shifts if s != 0}

    def taps(v):
        # Stack the K dilated-tap views of v along the sublane axis.
        # Tap s needs, within every length-L segment, v[:, l + s] with zeros
        # where l + s falls outside [0, L) ('same' zero padding).  A single
        # whole-slab lane rotation + the (lane % L) mask yields the correct
        # view for ALL Bblk segments at once: any value rolled in from a
        # neighbouring segment lands exactly on a masked (zeroed) position.
        parts = []
        for s in shifts:
            if s == 0:
                parts.append(v)
            else:
                rolled = pltpu.roll(v, shift=(-s) % N, axis=1)
                parts.append(jnp.where(masks[s], rolled, 0.0))
        return jnp.concatenate(parts, axis=0)          # (K*C, N)

    # First conv: one wide fused matmul + bias, then ReLU.
    h = jnp.dot(w2, taps(x), preferred_element_type=jnp.float32) + bias
    h = jnp.maximum(h, 0.0)
    # Second conv (same weights/bias), straight from vregs.
    y = jnp.dot(w2, taps(h), preferred_element_type=jnp.float32) + bias
    # Residual add; lane-dense store.
    o_ref[...] = (y + x).astype(o_ref.dtype)


def _choose_batch_block(B, C, L):
    """Batch elements per grid step, generation-friendly defaults."""
    budget = 8 << 20                        # bytes for x+o blocks, double-buffered
    per_b = 4 * (C * L * 4)                 # (x + o) * 2 buffers * 4B, per batch elem
    cap = max(1, budget // per_b)
    min_wide = max(1, -(-512 // L))         # aim for >= 512 lanes per matmul
    if B <= min(cap, 2 * min_wide):
        return B                            # small batch: one grid step (v5e-friendly)
    # Larger batch: >= 2 grid steps (both v7x TensorCores), wide blocks, VMEM-capped.
    return max(1, min(cap, max(min_wide, -(-B // 2))))


def residual1d_block(x, weight, bias, *, dilation=5, batch_block=None):
    """x: (B, C, L) float32; weight: (C, C, K); bias: (C,)."""
    B, C, L = x.shape
    C_out, C_in, K = weight.shape
    assert C_out == C and C_in == C

    # PyTorch 'same' padding: total = dilation*(K-1), left = total//2,
    # extra element (if odd) goes to the right.  Signed tap shifts vs. x.
    total_pad = dilation * (K - 1)
    pad_l = total_pad // 2
    shifts = tuple(k * dilation - pad_l for k in range(K))

    # Tap-fused weight: (C_out, K*C_in), column index = k*C_in + ci.
    w2 = jnp.transpose(weight, (0, 2, 1)).reshape(C, K * C).astype(jnp.float32)
    b_col = bias.reshape(C, 1).astype(jnp.float32)

    if batch_block is None:
        batch_block = _choose_batch_block(B, C, L)
    batch_block = max(1, min(int(batch_block), B))
    if (batch_block * L) % 128 != 0:
        # Fall back to one full-array block (block == full dims is always legal).
        batch_block = B

    num_blocks = pl.cdiv(B, batch_block)
    Bpad = num_blocks * batch_block
    xp = x if Bpad == B else jnp.pad(x, ((0, Bpad - B), (0, 0), (0, 0)))

    # Lane-fold: (Bpad, C, L) -> (C, Bpad*L).  Layout plumbing outside the kernel;
    # inside, each block is one lane-dense (C, Bblk*L) slab.
    xt = jnp.transpose(xp, (1, 0, 2)).reshape(C, Bpad * L)

    n_lanes = batch_block * L
    kernel = functools.partial(_residual1d_kernel, shifts=shifts, L=L)

    out_t = pl.pallas_call(
        kernel,
        out_shape=jax.ShapeDtypeStruct((C, Bpad * L), x.dtype),
        grid_spec=pltpu.PrefetchScalarGridSpec(
            num_scalar_prefetch=0,
            grid=(num_blocks,),
            in_specs=[
                pl.BlockSpec((C, K * C), lambda i: (0, 0)),      # tap-fused weights
                pl.BlockSpec((C, 1), lambda i: (0, 0)),          # bias column
                pl.BlockSpec((C, n_lanes), lambda i: (0, i)),    # lane-folded x
            ],
            out_specs=pl.BlockSpec((C, n_lanes), lambda i: (0, i)),
        ),
        compiler_params=pltpu.CompilerParams(
            dimension_semantics=("parallel",)),
    )(w2, b_col, xt)

    out = out_t.reshape(C, Bpad, L).transpose(1, 0, 2)
    return out[:B] if Bpad != B else out


def _reference(x, weight, bias, *, dilation=5):
    """Plain-JAX reference matching PyTorch Conv1d(padding='same')."""
    K = weight.shape[-1]
    total_pad = dilation * (K - 1)
    pad_l = total_pad // 2
    pad_r = total_pad - pad_l

    def conv(inp):
        return lax.conv_general_dilated(
            inp, weight,
            window_strides=(1,),
            padding=[(pad_l, pad_r)],
            rhs_dilation=(dilation,),
            dimension_numbers=("NCH", "OIH", "NCH"),
        ) + bias[None, :, None]

    h = jnp.maximum(conv(x), 0.0)
    return conv(h) + x


if __name__ == "__main__":
    # Small shapes consistent with the module: num_neurons=8, filter_size=3.
    B, C, L = 4, 8, 128
    K, DIL = 3, 5

    key = jax.random.PRNGKey(0)
    kx, kw, kb = jax.random.split(key, 3)
    x = jax.random.normal(kx, (B, C, L), dtype=jnp.float32)
    # Deterministic synthetic parameters (Conv1d weight layout: (C_out, C_in, K)).
    weight = jax.random.normal(kw, (C, C, K), dtype=jnp.float32) * 0.1
    bias = jax.random.normal(kb, (C,), dtype=jnp.float32) * 0.1

    out = jax.block_until_ready(residual1d_block(x, weight, bias, dilation=DIL))
    ref = _reference(x, weight, bias, dilation=DIL)
    assert out.shape == (B, C, L)
    assert jnp.allclose(out, ref, atol=1e-4, rtol=1e-4), "mismatch vs reference"

    # Also exercise the multi-block + padded-tail path (Bpad > B, 3 grid steps).
    B2 = 5
    x2 = jax.random.normal(jax.random.PRNGKey(1), (B2, C, L), dtype=jnp.float32)
    out2 = jax.block_until_ready(
        residual1d_block(x2, weight, bias, dilation=DIL, batch_block=2))
    ref2 = _reference(x2, weight, bias, dilation=DIL)
    assert out2.shape == (B2, C, L)
    assert jnp.allclose(out2, ref2, atol=1e-4, rtol=1e-4), "mismatch (padded tail)"

    print("KERNEL_OK")
</pallas_src>

<mosaic_0001>
module attributes {stable_mosaic.version = 11 : i64} {
  func.func @_residual1d_kernel(%arg0: i32, %arg1: memref<8x24xf32, #tpu.memory_space<vmem>>, %arg2: memref<8x1xf32, #tpu.memory_space<vmem>>, %arg3: memref<8x512xf32, #tpu.memory_space<vmem>>, %arg4: memref<8x512xf32, #tpu.memory_space<vmem>>) attributes {dimension_semantics = [#tpu.dimension_semantics<parallel>], iteration_bounds = array<i64: 1>, scalar_prefetch = 0 : i64, scratch_operands = 0 : i64, tpu.core_type = #tpu.core_type<tc>, window_params = [{pipeline_mode = #tpu.pipeline_mode<synchronous>, transform_indices = @transform_0, window_bounds = array<i64: 8, 24>}, {pipeline_mode = #tpu.pipeline_mode<synchronous>, transform_indices = @transform_1, window_bounds = array<i64: 8, 1>}, {transform_indices = @transform_2, window_bounds = array<i64: 8, 512>}, {transform_indices = @transform_3, window_bounds = array<i64: 8, 512>}]} {
    %c0 = arith.constant 0 : index
    %c0_0 = arith.constant 0 : index
    %0 = vector.load %arg1[%c0, %c0_0] : memref<8x24xf32, #tpu.memory_space<vmem>>, vector<8x24xf32>
    %c0_1 = arith.constant 0 : index
    %c0_2 = arith.constant 0 : index
    %1 = vector.load %arg2[%c0_1, %c0_2] : memref<8x1xf32, #tpu.memory_space<vmem>>, vector<8x1xf32>
    %c0_3 = arith.constant 0 : index
    %c0_4 = arith.constant 0 : index
    %2 = vector.load %arg3[%c0_3, %c0_4] : memref<8x512xf32, #tpu.memory_space<vmem>>, vector<8x512xf32>
    %3 = tpu.iota {dimensions = array<i32: 1>} : vector<8x512xi32>
    %c128_i32 = arith.constant 128 : i32
    %c0_i32 = arith.constant 0 : i32
    %4 = arith.cmpi eq, %c128_i32, %c0_i32 : i32
    %c1_i32 = arith.constant 1 : i32
    %5 = arith.select %4, %c1_i32, %c128_i32 : i32
    %6 = vector.broadcast %5 : i32 to vector<8x512xi32>
    %7 = arith.remsi %3, %6 : vector<8x512xi32>
    %c0_i32_5 = arith.constant 0 : i32
    %8 = vector.broadcast %c0_i32_5 : i32 to vector<8x512xi32>
    %9 = arith.cmpi ne, %7, %8 : vector<8x512xi32>
    %c0_i32_6 = arith.constant 0 : i32
    %10 = vector.broadcast %c0_i32_6 : i32 to vector<8x512xi32>
    %11 = arith.cmpi slt, %7, %10 : vector<8x512xi32>
    %c0_i32_7 = arith.constant 0 : i32
    %12 = arith.cmpi slt, %5, %c0_i32_7 : i32
    %13 = vector.broadcast %12 : i1 to vector<8x512xi1>
    %14 = vector.broadcast %13 : vector<8x512xi1> to vector<8x512xi1>
    %15 = arith.xori %11, %14 : vector<8x512xi1>
    %16 = arith.andi %15, %9 : vector<8x512xi1>
    %17 = vector.broadcast %5 : i32 to vector<8x512xi32>
    %18 = arith.addi %7, %17 : vector<8x512xi32>
    %19 = arith.select %16, %18, %7 : vector<8x512xi1>, vector<8x512xi32>
    %c5_i32 = arith.constant 5 : i32
    %20 = vector.broadcast %c5_i32 : i32 to vector<8x512xi32>
    %21 = arith.cmpi sge, %19, %20 : vector<8x512xi32>
    %c123_i32 = arith.constant 123 : i32
    %22 = vector.broadcast %c123_i32 : i32 to vector<8x512xi32>
    %23 = arith.cmpi slt, %19, %22 : vector<8x512xi32>
    %c5_i32_8 = arith.constant 5 : i32
    %24 = tpu.dynamic_rotate %2 by %c5_i32_8 dim 1 : vector<8x512xf32>, i32 -> vector<8x512xf32>
    %cst = arith.constant 0.000000e+00 : f32
    %25 = vector.broadcast %cst : f32 to vector<8x512xf32>
    %26 = arith.select %21, %24, %25 : vector<8x512xi1>, vector<8x512xf32>
    %c507_i32 = arith.constant 507 : i32
    %27 = tpu.dynamic_rotate %2 by %c507_i32 dim 1 : vector<8x512xf32>, i32 -> vector<8x512xf32>
    %cst_9 = arith.constant 0.000000e+00 : f32
    %28 = vector.broadcast %cst_9 : f32 to vector<8x512xf32>
    %29 = arith.select %23, %27, %28 : vector<8x512xi1>, vector<8x512xf32>
    %30 = tpu.concatenate %26, %2, %29 in 0 : vector<8x512xf32>, vector<8x512xf32>, vector<8x512xf32> -> vector<24x512xf32>
    %cst_10 = arith.constant dense<0.000000e+00> : vector<8x512xf32>
    %31 = tpu.matmul %0, %30, %cst_10 {dimension_numbers = #tpu.dot_dimension_numbers<[1], [0], [0], [1], [0, 0, 1, 1], [], []>} : vector<8x24xf32>, vector<24x512xf32>, vector<8x512xf32> -> vector<8x512xf32>
    %32 = vector.broadcast %1 : vector<8x1xf32> to vector<8x512xf32>
    %33 = arith.addf %31, %32 : vector<8x512xf32>
    %cst_11 = arith.constant 0.000000e+00 : f32
    %34 = vector.broadcast %cst_11 : f32 to vector<8x512xf32>
    %35 = arith.maximumf %33, %34 : vector<8x512xf32>
    %c5_i32_12 = arith.constant 5 : i32
    %36 = tpu.dynamic_rotate %35 by %c5_i32_12 dim 1 : vector<8x512xf32>, i32 -> vector<8x512xf32>
    %cst_13 = arith.constant 0.000000e+00 : f32
    %37 = vector.broadcast %cst_13 : f32 to vector<8x512xf32>
    %38 = arith.select %21, %36, %37 : vector<8x512xi1>, vector<8x512xf32>
    %c507_i32_14 = arith.constant 507 : i32
    %39 = tpu.dynamic_rotate %35 by %c507_i32_14 dim 1 : vector<8x512xf32>, i32 -> vector<8x512xf32>
    %cst_15 = arith.constant 0.000000e+00 : f32
    %40 = vector.broadcast %cst_15 : f32 to vector<8x512xf32>
    %41 = arith.select %23, %39, %40 : vector<8x512xi1>, vector<8x512xf32>
    %42 = tpu.concatenate %38, %35, %41 in 0 : vector<8x512xf32>, vector<8x512xf32>, vector<8x512xf32> -> vector<24x512xf32>
    %cst_16 = arith.constant dense<0.000000e+00> : vector<8x512xf32>
    %43 = tpu.matmul %0, %42, %cst_16 {dimension_numbers = #tpu.dot_dimension_numbers<[1], [0], [0], [1], [0, 0, 1, 1], [], []>} : vector<8x24xf32>, vector<24x512xf32>, vector<8x512xf32> -> vector<8x512xf32>
    %44 = vector.broadcast %1 : vector<8x1xf32> to vector<8x512xf32>
    %45 = arith.addf %43, %44 : vector<8x512xf32>
    %46 = arith.addf %45, %2 : vector<8x512xf32>
    %c0_17 = arith.constant 0 : index
    %c0_18 = arith.constant 0 : index
    %47 = vector.load %arg4[%c0_17, %c0_18] : memref<8x512xf32, #tpu.memory_space<vmem>>, vector<8x512xf32>
    tpu.vector_store %arg4[%c0_17, %c0_18], %46 {strides = array<i32>} : memref<8x512xf32, #tpu.memory_space<vmem>>, vector<8x512xf32>,
    return
  }
  func.func @transform_0(%arg0: i32) -> (i32, i32) {
    %c0_i32 = arith.constant 0 : i32
    %c0_i32_0 = arith.constant 0 : i32
    %c0_i32_1 = arith.constant 0 : i32
    return %c0_i32, %c0_i32_0 : i32, i32
  }
  func.func @transform_1(%arg0: i32) -> (i32, i32) {
    %c0_i32 = arith.constant 0 : i32
    %c0_i32_0 = arith.constant 0 : i32
    %c0_i32_1 = arith.constant 0 : i32
    return %c0_i32, %c0_i32_0 : i32, i32
  }
  func.func @transform_2(%arg0: i32) -> (i32, i32) {
    %c0_i32 = arith.constant 0 : i32
    %c0_i32_0 = arith.constant 0 : i32
    return %c0_i32, %arg0 : i32, i32
  }
  func.func @transform_3(%arg0: i32) -> (i32, i32) {
    %c0_i32 = arith.constant 0 : i32
    %c0_i32_0 = arith.constant 0 : i32
    return %c0_i32, %arg0 : i32, i32
  }
}

</mosaic_0001>

<llo_original>
// kernel: tpu_custom_call.1
$region0: #{tpu_custom_call.1}
  #allocation0 [shape = 'u32[]', space=smem, size = 0x4, offset = 0x4, fixed_abs, tag = 'smem constant byte address 0x4 - core index']
  #allocation1 [shape = 'u32[144,128]{1,0:T(1,128)}', space=vmem, size = 0x12000, scoped, tag = 'internal scratch']
  %s0 = inlined_call_operand.vmem [shape: f32[8,24], index: 0, kind: input, shape index: {}]
  %s1 = inlined_call_operand.vmem [shape: f32[8,1], index: 1, kind: input, shape index: {}]
  %s2 = inlined_call_operand.hbm [shape: f32[8,512], index: 2, kind: input, shape index: {}]
  %s3 = inlined_call_operand.hbm [shape: f32[8,512], index: 3, kind: output, shape index: {}]
  %s4 = sld [smem:[#allocation0]]
  $region26: #{tpu_custom_call.1} parent=0
    _
  %s6 = ssub.s32 1, %s4
  %s7 = scalar_select 0, %s6, %s4
  $region1: #{tpu_custom_call.1} parent=0
    #allocation2 [shape = 'u8[16384]{0}', space=vmem, size = 0x4000, scoped, tag = 'input window, operand 2, single buffered']
    #allocation3 [shape = 's32[1]{0}', space=sflag, size = 0x4, scoped, tag = 'scoped memory for tpu_custom_call.1']
    #allocation4 [shape = 's32[1]{0}', space=sflag, size = 0x4, scoped, tag = 'scoped memory for tpu_custom_call.1']
    #allocation5 [shape = 'u8[16384]{0}', space=vmem, size = 0x4000, scoped, tag = 'output window, operand 0, single buffered']
    %8 = vsyncpa [#allocation3], 0
    %9 = vsyncpa [#allocation4], 0
    // Predicated region
    $region2: #{tpu_custom_call.1} parent=1 // pred_check
      _
    $region3: #{tpu_custom_call.1} parent=1 // pred_check_branch
      %11 = sbr.rel (0) target = $region5
    $region4: #{tpu_custom_call.1} parent=1 // pred_region
      _
    $region5: #{tpu_custom_call.1} parent=1 // pred_fallthru
      _
    // Predicated region
    $region6: #{tpu_custom_call.1} parent=1 // pred_check
      _
    $region7: #{tpu_custom_call.1} parent=1 // pred_check_branch
      %13 = sbr.rel (0) target = $region9
    $region8: #{tpu_custom_call.1} parent=1 // pred_region
      _
    $region9: #{tpu_custom_call.1} parent=1 // pred_fallthru
      _
    // Predicated region
    $region10: #{tpu_custom_call.1} parent=1 // pred_check
      _
    $region11: #{tpu_custom_call.1} parent=1 // pred_check_branch
      %15 = sbr.rel (0) target = $region13
    $region12: #{tpu_custom_call.1} parent=1 // pred_region
      %s17 = ssub.s32 512, 512
      %18 = vsyncadd [#allocation3], %s17
      %s20 = sshll.u32 [#allocation2], 4
      %s21 = int_to_ptr.vmem [resolvable:$true] %s20
      %23 = dma.hbm_to_vmem [thread:$0]  %s2, 512, %s21, [#allocation3]
    $region13: #{tpu_custom_call.1} parent=1 // pred_fallthru
      _
    // Predicated region
    $region14: #{tpu_custom_call.1} parent=1 // pred_check
      _
    $region15: #{tpu_custom_call.1} parent=1 // pred_check_branch
      %25 = sbr.rel (0) target = $region17
    $region16: #{tpu_custom_call.1} parent=1 // pred_region
      %26 = dma.done [#allocation3], 512
    $region17: #{tpu_custom_call.1} parent=1 // pred_fallthru
      _
    %v27 = vld [vmem:[%s0] sm:$0xff]
    %v28 = vld [vmem:[%s1] sm:$0xff]
    %v29 = vld [vmem:[#allocation2] sm:$0xff]
    %v30 = vld [vmem:[#allocation2 + $0x8] sm:$0xff]
    %v31 = vld [vmem:[#allocation2 + $0x10] sm:$0xff]
    %v32 = vld [vmem:[#allocation2 + $0x18] sm:$0xff]
    %v33 = vlaneseq
    %v34 = vand.u32 %v33, 127
    %v35 = vadd.s32 %v34, 128
    %v36 = vadd.s32 %v34, 256
    %v37 = vadd.s32 %v34, 384
    %vm38 = vcmp.lt.s32.totalorder %v34, 0
    %v39 = vsub.s32 0, %v34
    %v40 = vsel %vm38, %v39, %v34
    %v41 = vshrl.u32 %v40, 7
    %v42 = vand.u32 %v40, 127
    %v43 = vsub.s32 0, %v42
    %v44 = vsel %vm38, %v43, %v42
    %vm45 = vcmp.lt.s32.totalorder %v35, 0
    %v46 = vsub.s32 0, %v35
    %v47 = vsel %vm45, %v46, %v35
    %v48 = vshrl.u32 %v47, 7
    %v49 = vand.u32 %v47, 127
    %v50 = vsub.s32 0, %v49
    %v51 = vsel %vm45, %v50, %v49
    %vm52 = vcmp.lt.s32.totalorder %v36, 0
    %v53 = vsub.s32 0, %v36
    %v54 = vsel %vm52, %v53, %v36
    %v55 = vshrl.u32 %v54, 7
    %v56 = vand.u32 %v54, 127
    %v57 = vsub.s32 0, %v56
    %v58 = vsel %vm52, %v57, %v56
    %vm59 = vcmp.lt.s32.totalorder %v37, 0
    %v60 = vsub.s32 0, %v37
    %v61 = vsel %vm59, %v60, %v37
    %v62 = vshrl.u32 %v61, 7
    %v63 = vand.u32 %v61, 127
    %v64 = vsub.s32 0, %v63
    %v65 = vsel %vm59, %v64, %v63
    %vm66 = vcmp.ne.s32.totalorder %v44, 0
    %vm67 = vcmp.ne.s32.totalorder %v51, 0
    %vm68 = vcmp.ne.s32.totalorder %v58, 0
    %vm69 = vcmp.ne.s32.totalorder %v65, 0
    %vm70 = vcmp.lt.s32.totalorder %v44, 0
    %vm71 = vcmp.lt.s32.totalorder %v51, 0
    %vm72 = vcmp.lt.s32.totalorder %v58, 0
    %vm73 = vcmp.lt.s32.totalorder %v65, 0
    %vm74 = vmand %vm70, %vm66
    %vm75 = vmand %vm71, %vm67
    %vm76 = vmand %vm72, %vm68
    %vm77 = vmand %vm73, %vm69
    %v78 = vadd.s32 %v44, 128
    %v79 = vadd.s32 %v51, 128
    %v80 = vadd.s32 %v58, 128
    %v81 = vadd.s32 %v65, 128
    %v82 = vsel %vm74, %v78, %v44
    %v83 = vsel %vm75, %v79, %v51
    %v84 = vsel %vm76, %v80, %v58
    %v85 = vsel %vm77, %v81, %v65
    %vm86 = vcmp.ge.s32.totalorder %v82, 5
    %vm87 = vcmp.ge.s32.totalorder %v83, 5
    %vm88 = vcmp.ge.s32.totalorder %v84, 5
    %vm89 = vcmp.ge.s32.totalorder %v85, 5
    %vm90 = vcmp.lt.s32.totalorder %v82, 123
    %vm91 = vcmp.lt.s32.totalorder %v83, 123
    %vm92 = vcmp.lt.s32.totalorder %v84, 123
    %vm93 = vcmp.lt.s32.totalorder %v85, 123
    %94 = vrot.lane.b32.xlu0 %v29, 5
    %v95 = vpop.permute.xlu0 %94
    %96 = vrot.lane.b32.xlu0 %v30, 5
    %v97 = vpop.permute.xlu0 %96
    %98 = vrot.lane.b32.xlu0 %v31, 5
    %v99 = vpop.permute.xlu0 %98
    %100 = vrot.lane.b32.xlu0 %v32, 5
    %v101 = vpop.permute.xlu0 %100
    %vm102 = vcmp.lt.s32.totalorder %v34, 5
    %v103 = vsel %vm102, %v99, %v101
    %v104 = vsel %vm102, %v97, %v99
    %v105 = vsel %vm102, %v95, %v97
    %v106 = vsel %vm102, %v101, %v95
    %v107 = vsel %vm86, %v106, 0.0
    %v108 = vsel %vm87, %v105, 0.0
    %v109 = vsel %vm88, %v104, 0.0
    %v110 = vsel %vm89, %v103, 0.0
    %111 = vrot.lane.b32.xlu0 %v29, 123
    %v112 = vpop.permute.xlu0 %111
    %113 = vrot.lane.b32.xlu0 %v30, 123
    %v114 = vpop.permute.xlu0 %113
    %115 = vrot.lane.b32.xlu0 %v31, 123
    %v116 = vpop.permute.xlu0 %115
    %117 = vrot.lane.b32.xlu0 %v32, 123
    %v118 = vpop.permute.xlu0 %117
    %vm119 = vcmp.lt.s32.totalorder %v34, 123
    %v120 = vsel %vm119, %v116, %v118
    %v121 = vsel %vm119, %v114, %v116
    %v122 = vsel %vm119, %v112, %v114
    %v123 = vsel %vm119, %v118, %v112
    %v124 = vsel %vm90, %v122, 0.0
    %v125 = vsel %vm91, %v121, 0.0
    %v126 = vsel %vm92, %v120, 0.0
    %v127 = vsel %vm93, %v123, 0.0
    %129 = vset.pattern.permute.xlu0 0
    %130 = vperm.xlu0 %129, %v28
    %v131 = vpop.permute.xlu0 %130
    %vm133 = vcmask 195584
    %v135 = vsel %vm133, %v27, 0
    %137 = vmatprep.subr.mxu0 %v108
    %138 = vmatpush1.msra.mxu0 %v107
    %139 = vmatprep.subr.mxu0 %v30
    %140 = vmatpush1.msra.mxu0 %v29
    %141 = vmatprep.subr.mxu0 %v125
    %142 = vmatpush1.msra.mxu0 %v124
    %143 = vmatprep.subr.mxu0 0.0
    %144 = vmatpush1.msra.mxu0 0.0
    %145 = vmatprep.subr.mxu0 0.0
    %146 = vmatpush1.msra.mxu0 0.0
    %147 = vmatprep.subr.mxu0 0.0
    %148 = vmatpush1.msra.mxu0 0.0
    %149 = vmatprep.subr.mxu0 0.0
    %150 = vmatpush1.msra.mxu0 0.0
    %151 = vmatprep.subr.mxu0 0.0
    %152 = vmatpush1.msra.mxu0 0.0
    %153 = vmatprep.subr.mxu0 0.0
    %154 = vmatpush1.msra.mxu0 0.0
    %155 = vmatprep.subr.mxu0 0.0
    %156 = vmatpush1.msra.mxu0 0.0
    %157 = vmatprep.subr.mxu0 0.0
    %158 = vmatpush1.msra.mxu0 0.0
    %159 = vmatprep.subr.mxu0 0.0
    %160 = vmatpush1.msra.mxu0 0.0
    %161 = vmatprep.subr.mxu0 0.0
    %162 = vmatpush1.msra.mxu0 0.0
    %163 = vmatprep.subr.mxu0 0.0
    %164 = vmatpush1.msra.mxu0 0.0
    %165 = vmatprep.subr.mxu0 0.0
    %166 = vmatpush1.msra.mxu0 0.0
    %167 = vmatprep.subr.mxu0 0.0
    %168 = vmatpush1.msra.mxu0 0.0
    %169 = vmatprep.subr.mxu0 0.0
    %170 = vmatpush1.msra.mxu0 0.0
    %171 = vmatprep.subr.mxu0 0.0
    %172 = vmatpush1.msra.mxu0 0.0
    %173 = vmatprep.subr.mxu0 0.0
    %174 = vmatpush1.msra.mxu0 0.0
    %175 = vmatprep.subr.mxu0 0.0
    %176 = vmatpush1.msra.mxu0 0.0
    %177 = vmatprep.subr.mxu0 0.0
    %178 = vmatpush1.msra.mxu0 0.0
    %179 = vmatprep.subr.mxu0 0.0
    %180 = vmatpush1.msra.mxu0 0.0
    %181 = vmatprep.subr.mxu0 0.0
    %182 = vmatpush1.msra.mxu0 0.0
    %183 = vmatprep.subr.mxu0 0.0
    %184 = vmatpush1.msra.mxu0 0.0
    %185 = vmatprep.subr.mxu0 0.0
    %186 = vmatpush1.msra.mxu0 0.0
    %187 = vmatprep.subr.mxu0 0.0
    %188 = vmatpush1.msra.mxu0 0.0
    %189 = vmatprep.subr.mxu0 0.0
    %190 = vmatpush1.msra.mxu0 0.0
    %191 = vmatprep.subr.mxu0 0.0
    %192 = vmatpush1.msra.mxu0 0.0
    %193 = vmatprep.subr.mxu0 0.0
    %194 = vmatpush1.msra.mxu0 0.0
    %195 = vmatprep.subr.mxu0 0.0
    %196 = vmatpush1.msra.mxu0 0.0
    %197 = vmatprep.subr.mxu0 0.0
    %198 = vmatpush1.msra.mxu0 0.0
    %199 = vmatprep.subr.mxu0 0.0
    %200 = vmatpush1.msra.mxu0 0.0
    %201 = vmatprep.mubr.f32.mxu0 0.0
    %202 = vmatmul.mubr.f32.gmra.mrb[0].mxu0 %v135
    %v203 = vpop.f32.mrb[0].mxu0
    %v204 = vadd.f32 %v131, %v203
    %v205 = vpop.f32.mrb[0].mxu0
    %v206 = vadd.f32 %v131, %v205
    %207 = vdwg.mxu0
    %208 = vmatprep.subr.mxu0 %v110
    %209 = vmatpush1.msra.mxu0 %v109
    %210 = vmatprep.subr.mxu0 %v32
    %211 = vmatpush1.msra.mxu0 %v31
    %212 = vmatprep.subr.mxu0 %v127
    %213 = vmatpush1.msra.mxu0 %v126
    %214 = vmatprep.subr.mxu0 0.0
    %215 = vmatpush1.msra.mxu0 0.0
    %216 = vmatprep.subr.mxu0 0.0
    %217 = vmatpush1.msra.mxu0 0.0
    %218 = vmatprep.subr.mxu0 0.0
    %219 = vmatpush1.msra.mxu0 0.0
    %220 = vmatprep.subr.mxu0 0.0
    %221 = vmatpush1.msra.mxu0 0.0
    %222 = vmatprep.subr.mxu0 0.0
    %223 = vmatpush1.msra.mxu0 0.0
    %224 = vmatprep.subr.mxu0 0.0
    %225 = vmatpush1.msra.mxu0 0.0
    %226 = vmatprep.subr.mxu0 0.0
    %227 = vmatpush1.msra.mxu0 0.0
    %228 = vmatprep.subr.mxu0 0.0
    %229 = vmatpush1.msra.mxu0 0.0
    %230 = vmatprep.subr.mxu0 0.0
    %231 = vmatpush1.msra.mxu0 0.0
    %232 = vmatprep.subr.mxu0 0.0
    %233 = vmatpush1.msra.mxu0 0.0
    %234 = vmatprep.subr.mxu0 0.0
    %235 = vmatpush1.msra.mxu0 0.0
    %236 = vmatprep.subr.mxu0 0.0
    %237 = vmatpush1.msra.mxu0 0.0
    %238 = vmatprep.subr.mxu0 0.0
    %239 = vmatpush1.msra.mxu0 0.0
    %240 = vmatprep.subr.mxu0 0.0
    %241 = vmatpush1.msra.mxu0 0.0
    %242 = vmatprep.subr.mxu0 0.0
    %243 = vmatpush1.msra.mxu0 0.0
    %244 = vmatprep.subr.mxu0 0.0
    %245 = vmatpush1.msra.mxu0 0.0
    %246 = vmatprep.subr.mxu0 0.0
    %247 = vmatpush1.msra.mxu0 0.0
    %248 = vmatprep.subr.mxu0 0.0
    %249 = vmatpush1.msra.mxu0 0.0
    %250 = vmatprep.subr.mxu0 0.0
    %251 = vmatpush1.msra.mxu0 0.0
    %252 = vmatprep.subr.mxu0 0.0
    %253 = vmatpush1.msra.mxu0 0.0
    %254 = vmatprep.subr.mxu0 0.0
    %255 = vmatpush1.msra.mxu0 0.0
    %256 = vmatprep.subr.mxu0 0.0
    %257 = vmatpush1.msra.mxu0 0.0
    %258 = vmatprep.subr.mxu0 0.0
    %259 = vmatpush1.msra.mxu0 0.0
    %260 = vmatprep.subr.mxu0 0.0
    %261 = vmatpush1.msra.mxu0 0.0
    %262 = vmatprep.subr.mxu0 0.0
    %263 = vmatpush1.msra.mxu0 0.0
    %264 = vmatprep.subr.mxu0 0.0
    %265 = vmatpush1.msra.mxu0 0.0
    %266 = vmatprep.subr.mxu0 0.0
    %267 = vmatpush1.msra.mxu0 0.0
    %268 = vmatprep.subr.mxu0 0.0
    %269 = vmatpush1.msra.mxu0 0.0
    %270 = vmatprep.subr.mxu0 0.0
    %271 = vmatpush1.msra.mxu0 0.0
    %272 = vmatprep.mubr.f32.mxu0 0.0
    %273 = vmatmul.mubr.f32.gmra.mrb[0].mxu0 %v135
    %v274 = vpop.f32.mrb[0].mxu0
    %v275 = vadd.f32 %v131, %v274
    %v276 = vpop.f32.mrb[0].mxu0
    %v277 = vadd.f32 %v131, %v276
    %278 = vdwg.mxu0
    %v279 = vmax.f32 %v204, 0.0
    %v280 = vmax.f32 %v206, 0.0
    %v281 = vmax.f32 %v275, 0.0
    %v282 = vmax.f32 %v277, 0.0
    %283 = vrot.lane.b32.xlu0 %v279, 5
    %v284 = vpop.permute.xlu0 %283
    %285 = vrot.lane.b32.xlu0 %v280, 5
    %v286 = vpop.permute.xlu0 %285
    %287 = vrot.lane.b32.xlu0 %v281, 5
    %v288 = vpop.permute.xlu0 %287
    %289 = vrot.lane.b32.xlu0 %v282, 5
    %v290 = vpop.permute.xlu0 %289
    %v291 = vsel %vm102, %v288, %v290
    %v292 = vsel %vm102, %v286, %v288
    %v293 = vsel %vm102, %v284, %v286
    %v294 = vsel %vm102, %v290, %v284
    %v295 = vsel %vm86, %v294, 0.0
    %v296 = vsel %vm87, %v293, 0.0
    %v297 = vsel %vm88, %v292, 0.0
    %v298 = vsel %vm89, %v291, 0.0
    %299 = vrot.lane.b32.xlu0 %v279, 123
    %v300 = vpop.permute.xlu0 %299
    %301 = vrot.lane.b32.xlu0 %v280, 123
    %v302 = vpop.permute.xlu0 %301
    %303 = vrot.lane.b32.xlu0 %v281, 123
    %v304 = vpop.permute.xlu0 %303
    %305 = vrot.lane.b32.xlu0 %v282, 123
    %v306 = vpop.permute.xlu0 %305
    %v307 = vsel %vm119, %v304, %v306
    %v308 = vsel %vm119, %v302, %v304
    %v309 = vsel %vm119, %v300, %v302
    %v310 = vsel %vm119, %v306, %v300
    %v311 = vsel %vm90, %v309, 0.0
    %v312 = vsel %vm91, %v308, 0.0
    %v313 = vsel %vm92, %v307, 0.0
    %v314 = vsel %vm93, %v310, 0.0
    %315 = vmatprep.subr.mxu0 %v296
    %316 = vmatpush1.msra.mxu0 %v295
    %317 = vmatprep.subr.mxu0 %v280
    %318 = vmatpush1.msra.mxu0 %v279
    %319 = vmatprep.subr.mxu0 %v312
    %320 = vmatpush1.msra.mxu0 %v311
    %321 = vmatprep.subr.mxu0 0.0
    %322 = vmatpush1.msra.mxu0 0.0
    %323 = vmatprep.subr.mxu0 0.0
    %324 = vmatpush1.msra.mxu0 0.0
    %325 = vmatprep.subr.mxu0 0.0
    %326 = vmatpush1.msra.mxu0 0.0
    %327 = vmatprep.subr.mxu0 0.0
    %328 = vmatpush1.msra.mxu0 0.0
    %329 = vmatprep.subr.mxu0 0.0
    %330 = vmatpush1.msra.mxu0 0.0
    %331 = vmatprep.subr.mxu0 0.0
    %332 = vmatpush1.msra.mxu0 0.0
    %333 = vmatprep.subr.mxu0 0.0
    %334 = vmatpush1.msra.mxu0 0.0
    %335 = vmatprep.subr.mxu0 0.0
    %336 = vmatpush1.msra.mxu0 0.0
    %337 = vmatprep.subr.mxu0 0.0
    %338 = vmatpush1.msra.mxu0 0.0
    %339 = vmatprep.subr.mxu0 0.0
    %340 = vmatpush1.msra.mxu0 0.0
    %341 = vmatprep.subr.mxu0 0.0
    %342 = vmatpush1.msra.mxu0 0.0
    %343 = vmatprep.subr.mxu0 0.0
    %344 = vmatpush1.msra.mxu0 0.0
    %345 = vmatprep.subr.mxu0 0.0
    %346 = vmatpush1.msra.mxu0 0.0
    %347 = vmatprep.subr.mxu0 0.0
    %348 = vmatpush1.msra.mxu0 0.0
    %349 = vmatprep.subr.mxu0 0.0
    %350 = vmatpush1.msra.mxu0 0.0
    %351 = vmatprep.subr.mxu0 0.0
    %352 = vmatpush1.msra.mxu0 0.0
    %353 = vmatprep.subr.mxu0 0.0
    %354 = vmatpush1.msra.mxu0 0.0
    %355 = vmatprep.subr.mxu0 0.0
    %356 = vmatpush1.msra.mxu0 0.0
    %357 = vmatprep.subr.mxu0 0.0
    %358 = vmatpush1.msra.mxu0 0.0
    %359 = vmatprep.subr.mxu0 0.0
    %360 = vmatpush1.msra.mxu0 0.0
    %361 = vmatprep.subr.mxu0 0.0
    %362 = vmatpush1.msra.mxu0 0.0
    %363 = vmatprep.subr.mxu0 0.0
    %364 = vmatpush1.msra.mxu0 0.0
    %365 = vmatprep.subr.mxu0 0.0
    %366 = vmatpush1.msra.mxu0 0.0
    %367 = vmatprep.subr.mxu0 0.0
    %368 = vmatpush1.msra.mxu0 0.0
    %369 = vmatprep.subr.mxu0 0.0
    %370 = vmatpush1.msra.mxu0 0.0
    %371 = vmatprep.subr.mxu0 0.0
    %372 = vmatpush1.msra.mxu0 0.0
    %373 = vmatprep.subr.mxu0 0.0
    %374 = vmatpush1.msra.mxu0 0.0
    %375 = vmatprep.subr.mxu0 0.0
    %376 = vmatpush1.msra.mxu0 0.0
    %377 = vmatprep.subr.mxu0 0.0
    %378 = vmatpush1.msra.mxu0 0.0
    %379 = vmatprep.mubr.f32.mxu0 0.0
    %380 = vmatmul.mubr.f32.gmra.mrb[0].mxu0 %v135
    %v381 = vpop.f32.mrb[0].mxu0
    %v382 = vadd.f32 %v131, %v381
    %v383 = vpop.f32.mrb[0].mxu0
    %v384 = vadd.f32 %v131, %v383
    %385 = vdwg.mxu0
    %386 = vmatprep.subr.mxu0 %v298
    %387 = vmatpush1.msra.mxu0 %v297
    %388 = vmatprep.subr.mxu0 %v282
    %389 = vmatpush1.msra.mxu0 %v281
    %390 = vmatprep.subr.mxu0 %v314
    %391 = vmatpush1.msra.mxu0 %v313
    %392 = vmatprep.subr.mxu0 0.0
    %393 = vmatpush1.msra.mxu0 0.0
    %394 = vmatprep.subr.mxu0 0.0
    %395 = vmatpush1.msra.mxu0 0.0
    %396 = vmatprep.subr.mxu0 0.0
    %397 = vmatpush1.msra.mxu0 0.0
    %398 = vmatprep.subr.mxu0 0.0
    %399 = vmatpush1.msra.mxu0 0.0
    %400 = vmatprep.subr.mxu0 0.0
    %401 = vmatpush1.msra.mxu0 0.0
    %402 = vmatprep.subr.mxu0 0.0
    %403 = vmatpush1.msra.mxu0 0.0
    %404 = vmatprep.subr.mxu0 0.0
    %405 = vmatpush1.msra.mxu0 0.0
    %406 = vmatprep.subr.mxu0 0.0
    %407 = vmatpush1.msra.mxu0 0.0
    %408 = vmatprep.subr.mxu0 0.0
    %409 = vmatpush1.msra.mxu0 0.0
    %410 = vmatprep.subr.mxu0 0.0
    %411 = vmatpush1.msra.mxu0 0.0
    %412 = vmatprep.subr.mxu0 0.0
    %413 = vmatpush1.msra.mxu0 0.0
    %414 = vmatprep.subr.mxu0 0.0
    %415 = vmatpush1.msra.mxu0 0.0
    %416 = vmatprep.subr.mxu0 0.0
    %417 = vmatpush1.msra.mxu0 0.0
    %418 = vmatprep.subr.mxu0 0.0
    %419 = vmatpush1.msra.mxu0 0.0
    %420 = vmatprep.subr.mxu0 0.0
    %421 = vmatpush1.msra.mxu0 0.0
    %422 = vmatprep.subr.mxu0 0.0
    %423 = vmatpush1.msra.mxu0 0.0
    %424 = vmatprep.subr.mxu0 0.0
    %425 = vmatpush1.msra.mxu0 0.0
    %426 = vmatprep.subr.mxu0 0.0
    %427 = vmatpush1.msra.mxu0 0.0
    %428 = vmatprep.subr.mxu0 0.0
    %429 = vmatpush1.msra.mxu0 0.0
    %430 = vmatprep.subr.mxu0 0.0
    %431 = vmatpush1.msra.mxu0 0.0
    %432 = vmatprep.subr.mxu0 0.0
    %433 = vmatpush1.msra.mxu0 0.0
    %434 = vmatprep.subr.mxu0 0.0
    %435 = vmatpush1.msra.mxu0 0.0
    %436 = vmatprep.subr.mxu0 0.0
    %437 = vmatpush1.msra.mxu0 0.0
    %438 = vmatprep.subr.mxu0 0.0
    %439 = vmatpush1.msra.mxu0 0.0
    %440 = vmatprep.subr.mxu0 0.0
    %441 = vmatpush1.msra.mxu0 0.0
    %442 = vmatprep.subr.mxu0 0.0
    %443 = vmatpush1.msra.mxu0 0.0
    %444 = vmatprep.subr.mxu0 0.0
    %445 = vmatpush1.msra.mxu0 0.0
    %446 = vmatprep.subr.mxu0 0.0
    %447 = vmatpush1.msra.mxu0 0.0
    %448 = vmatprep.subr.mxu0 0.0
    %449 = vmatpush1.msra.mxu0 0.0
    %450 = vmatprep.mubr.f32.mxu0 0.0
    %451 = vmatmul.mubr.f32.gmra.mrb[0].mxu0 %v135
    %v452 = vpop.f32.mrb[0].mxu0
    %v453 = vadd.f32 %v131, %v452
    %v454 = vpop.f32.mrb[0].mxu0
    %v455 = vadd.f32 %v131, %v454
    %456 = vdwg.mxu0
    %v457 = vadd.f32 %v382, %v29
    %v458 = vadd.f32 %v384, %v30
    %v459 = vadd.f32 %v453, %v31
    %v460 = vadd.f32 %v455, %v32
    %461 = vst [vmem:[#allocation5] sm:$0xff] %v457
    %462 = vst [vmem:[#allocation5 + $0x8] sm:$0xff] %v458
    %463 = vst [vmem:[#allocation5 + $0x10] sm:$0xff] %v459
    %464 = vst [vmem:[#allocation5 + $0x18] sm:$0xff] %v460
    // Predicated region
    $region18: #{tpu_custom_call.1} parent=1 // pred_check
      _
    $region19: #{tpu_custom_call.1} parent=1 // pred_check_branch
      %466 = sbr.rel (0) target = $region21
    $region20: #{tpu_custom_call.1} parent=1 // pred_region
      %s468 = ssub.s32 512, 512
      %469 = vsyncadd [#allocation4], %s468
      %s471 = sshll.u32 [#allocation5], 4
      %s472 = int_to_ptr.vmem [resolvable:$true] %s471
      %474 = dma.vmem_to_hbm [thread:$0]  %s472, 512, %s3, [#allocation4]
    $region21: #{tpu_custom_call.1} parent=1 // pred_fallthru
      _
    // Predicated region
    $region22: #{tpu_custom_call.1} parent=1 // pred_check
      _
    $region23: #{tpu_custom_call.1} parent=1 // pred_check_branch
      %476 = sbr.rel (0) target = $region25
    $region24: #{tpu_custom_call.1} parent=1 // pred_region
      %477 = dma.done [#allocation4], 512
    $region25: #{tpu_custom_call.1} parent=1 // pred_fallthru
      _
    %478 = vsyncpa [#allocation3], 1
    %479 = vsyncpa [#allocation4], 1

</llo_original>
